<compile_context>
chip_gen: v7x
topology: tpu7x:2x2x1
jax: 0.10.0
libtpu: 0.0.40
codegen_flags: <defaults>
</compile_context>

<pallas_src>
import functools

import jax
import jax.numpy as jnp
from jax.experimental import pallas as pl
from jax.experimental.pallas import tpu as pltpu

BN_EPS = 1e-5
LANE = 128  # padded feature width (vreg lane / MXU width)


def actor_kernel(state_ref, w_ref, v_ref, out_ref):
    """Fused Actor forward.

    state_ref: (B, 128)       state, zero-padded on the feature axis
    w_ref    : (4, 128, 128)  [w1, w2, w3, w4], each zero-padded to 128x128
    v_ref    : (8, 128)       rows: b1, gamma, beta, b2, b3, b4, 0, 0
    out_ref  : (B, 128)       lane-dense output; caller slices [:, :action_size]
    """
    x = state_ref[...]

    b1 = v_ref[0:1, :]
    gamma = v_ref[1:2, :]
    beta = v_ref[2:3, :]
    b2 = v_ref[3:4, :]
    b3 = v_ref[4:5, :]
    b4 = v_ref[5:6, :]

    # fc1 (padded state columns hit zero rows of w1 -> exact result)
    h = jnp.dot(x, w_ref[0], preferred_element_type=jnp.float32) + b1

    # BatchNorm1d, training mode (biased batch variance), single-pass stats.
    mean = jnp.mean(h, axis=0, keepdims=True)
    ex2 = jnp.mean(h * h, axis=0, keepdims=True)
    var = ex2 - mean * mean
    h = (h - mean) * jax.lax.rsqrt(var + BN_EPS) * gamma + beta
    h = jnp.maximum(h, 0.0)

    # fc2 + relu
    h = jnp.maximum(
        jnp.dot(h, w_ref[1], preferred_element_type=jnp.float32) + b2, 0.0)
    # fc3 + relu (columns >= 64 are zero-padded -> stay exactly 0 after relu)
    h = jnp.maximum(
        jnp.dot(h, w_ref[2], preferred_element_type=jnp.float32) + b3, 0.0)
    # fc4 + tanh (columns >= action_size are zero -> tanh(0) = 0, sliced outside)
    out_ref[...] = jnp.tanh(
        jnp.dot(h, w_ref[3], preferred_element_type=jnp.float32) + b4)


def _pad2(a, rows, cols):
    return jnp.pad(a, ((0, rows - a.shape[0]), (0, cols - a.shape[1])))


def pack_actor_params(p):
    """Pack raw params into 2 lane-dense arrays (one-time, outside the hot path)."""
    assert p["w1"].shape[0] <= LANE, "state_size > 128 not handled by this packing"
    w_stack = jnp.stack([
        _pad2(p["w1"], LANE, LANE),
        _pad2(p["w2"], LANE, LANE),
        _pad2(p["w3"], LANE, LANE),
        _pad2(p["w4"], LANE, LANE),
    ])

    def row(v):
        v = v.reshape(1, -1)
        return jnp.pad(v, ((0, 0), (0, LANE - v.shape[1])))

    vecs = jnp.concatenate(
        [row(p["b1"]), row(p["gamma"]), row(p["beta"]),
         row(p["b2"]), row(p["b3"]), row(p["b4"]),
         jnp.zeros((2, LANE), jnp.float32)],
        axis=0)
    return w_stack, vecs


@functools.partial(jax.jit, static_argnames=("action_size",))
def actor_forward(state, w_stack, vecs, *, action_size):
    """state: (B, state_size) fp32, B > 1 (BatchNorm training mode)."""
    B, S = state.shape
    x = jnp.pad(state, ((0, 0), (0, LANE - S))) if S < LANE else state

    cost = pl.CostEstimate(
        flops=2 * B * LANE * LANE * 4,
        transcendentals=B * LANE + LANE,           # tanh + rsqrt
        bytes_accessed=4 * (x.size + w_stack.size + vecs.size + B * LANE),
    )

    vmem = pl.BlockSpec(memory_space=pltpu.MemorySpace.VMEM)
    out = pl.pallas_call(
        actor_kernel,
        out_shape=jax.ShapeDtypeStruct((B, LANE), jnp.float32),
        in_specs=[vmem, vmem, vmem],
        out_specs=vmem,
        cost_estimate=cost,
    )(x, w_stack, vecs)
    return out[:, :action_size]


def init_actor_params(key, state_size, action_size):
    """Deterministic init mimicking PyTorch Linear default (U[-1/sqrt(fan_in), +])."""
    def linear(k, fan_in, fan_out):
        kw, kb = jax.random.split(k)
        bound = 1.0 / jnp.sqrt(jnp.float32(fan_in))
        w = jax.random.uniform(kw, (fan_in, fan_out), jnp.float32, -bound, bound)
        b = jax.random.uniform(kb, (fan_out,), jnp.float32, -bound, bound)
        return w, b

    k1, k2, k3, k4 = jax.random.split(key, 4)
    w1, b1 = linear(k1, state_size, 128)
    w2, b2 = linear(k2, 128, 128)
    w3, b3 = linear(k3, 128, 64)
    w4, b4 = linear(k4, 64, action_size)
    return dict(
        w1=w1, b1=b1,
        gamma=jnp.ones((128,), jnp.float32),   # BatchNorm1d weight init
        beta=jnp.zeros((128,), jnp.float32),   # BatchNorm1d bias init
        w2=w2, b2=b2, w3=w3, b3=b3, w4=w4, b4=b4,
    )


if __name__ == "__main__":
    # B=128 fills the MXU row / sublane dimension (the single biggest lever
    # flagged in the perf review) while staying tiny in absolute size.
    B, STATE_SIZE, ACTION_SIZE = 128, 32, 8

    key = jax.random.PRNGKey(0)
    k_params, k_state = jax.random.split(key)
    params = init_actor_params(k_params, STATE_SIZE, ACTION_SIZE)
    w_stack, vecs = pack_actor_params(params)
    state = jax.random.normal(k_state, (B, STATE_SIZE), jnp.float32)

    out = actor_forward(state, w_stack, vecs, action_size=ACTION_SIZE)
    jax.block_until_ready(out)

    # Pure-JAX reference (mirrors the PyTorch forward, two-pass BN stats).
    def ref(x, p):
        h1 = x @ p["w1"] + p["b1"]
        m = h1.mean(0, keepdims=True)
        v = ((h1 - m) ** 2).mean(0, keepdims=True)
        h1 = (h1 - m) / jnp.sqrt(v + BN_EPS) * p["gamma"] + p["beta"]
        h1 = jnp.maximum(h1, 0.0)
        h2 = jnp.maximum(h1 @ p["w2"] + p["b2"], 0.0)
        h3 = jnp.maximum(h2 @ p["w3"] + p["b3"], 0.0)
        return jnp.tanh(h3 @ p["w4"] + p["b4"])

    ref_out = ref(state, params)
    assert out.shape == (B, ACTION_SIZE)
    assert jnp.allclose(out, ref_out, atol=1e-4, rtol=1e-4), (
        float(jnp.max(jnp.abs(out - ref_out))))

    print("KERNEL_OK")
</pallas_src>

<mosaic_0001>
module attributes {stable_mosaic.version = 11 : i64} {
  func.func @actor_kernel(%arg0: memref<128x128xf32, #tpu.memory_space<vmem>>, %arg1: memref<4x128x128xf32, #tpu.memory_space<vmem>>, %arg2: memref<8x128xf32, #tpu.memory_space<vmem>>, %arg3: memref<128x128xf32, #tpu.memory_space<vmem>>) attributes {dimension_semantics = [], scalar_prefetch = 0 : i64, scratch_operands = 0 : i64, tpu.core_type = #tpu.core_type<tc>} {
    %c0 = arith.constant 0 : index
    %c0_0 = arith.constant 0 : index
    %0 = vector.load %arg0[%c0, %c0_0] : memref<128x128xf32, #tpu.memory_space<vmem>>, vector<128x128xf32>
    %c0_1 = arith.constant 0 : index
    %c0_2 = arith.constant 0 : index
    %1 = vector.load %arg2[%c0_1, %c0_2] : memref<8x128xf32, #tpu.memory_space<vmem>>, vector<1x128xf32>
    %c1 = arith.constant 1 : index
    %c0_3 = arith.constant 0 : index
    %2 = vector.load %arg2[%c1, %c0_3] : memref<8x128xf32, #tpu.memory_space<vmem>>, vector<1x128xf32>
    %c2 = arith.constant 2 : index
    %c0_4 = arith.constant 0 : index
    %3 = vector.load %arg2[%c2, %c0_4] : memref<8x128xf32, #tpu.memory_space<vmem>>, vector<1x128xf32>
    %c3 = arith.constant 3 : index
    %c0_5 = arith.constant 0 : index
    %4 = vector.load %arg2[%c3, %c0_5] : memref<8x128xf32, #tpu.memory_space<vmem>>, vector<1x128xf32>
    %c4 = arith.constant 4 : index
    %c0_6 = arith.constant 0 : index
    %5 = vector.load %arg2[%c4, %c0_6] : memref<8x128xf32, #tpu.memory_space<vmem>>, vector<1x128xf32>
    %c5 = arith.constant 5 : index
    %c0_7 = arith.constant 0 : index
    %6 = vector.load %arg2[%c5, %c0_7] : memref<8x128xf32, #tpu.memory_space<vmem>>, vector<1x128xf32>
    %c0_8 = arith.constant 0 : index
    %c0_9 = arith.constant 0 : index
    %c0_10 = arith.constant 0 : index
    %7 = vector.load %arg1[%c0_8, %c0_9, %c0_10] : memref<4x128x128xf32, #tpu.memory_space<vmem>>, vector<1x128x128xf32>
    %8 = vector.shape_cast %7 : vector<1x128x128xf32> to vector<128x128xf32>
    %cst = arith.constant dense<0.000000e+00> : vector<128x128xf32>
    %9 = tpu.matmul %0, %8, %cst {dimension_numbers = #tpu.dot_dimension_numbers<[1], [0], [0], [1], [0, 0, 1, 1], [], []>} : vector<128x128xf32>, vector<128x128xf32>, vector<128x128xf32> -> vector<128x128xf32>
    %10 = vector.broadcast %1 : vector<1x128xf32> to vector<128x128xf32>
    %11 = arith.addf %9, %10 : vector<128x128xf32>
    %cst_11 = arith.constant dense<0.000000e+00> : vector<128xf32>
    %12 = vector.multi_reduction <add>, %11, %cst_11 [0] : vector<128x128xf32> to vector<128xf32>
    %13 = vector.shape_cast %12 : vector<128xf32> to vector<1x128xf32>
    %cst_12 = arith.constant 1.280000e+02 : f32
    %14 = vector.broadcast %cst_12 : f32 to vector<1x128xf32>
    %15 = arith.divf %13, %14 : vector<1x128xf32>
    %16 = arith.mulf %11, %11 : vector<128x128xf32>
    %cst_13 = arith.constant dense<0.000000e+00> : vector<128xf32>
    %17 = vector.multi_reduction <add>, %16, %cst_13 [0] : vector<128x128xf32> to vector<128xf32>
    %18 = vector.shape_cast %17 : vector<128xf32> to vector<1x128xf32>
    %cst_14 = arith.constant 1.280000e+02 : f32
    %19 = vector.broadcast %cst_14 : f32 to vector<1x128xf32>
    %20 = arith.divf %18, %19 : vector<1x128xf32>
    %21 = arith.mulf %15, %15 : vector<1x128xf32>
    %22 = arith.subf %20, %21 : vector<1x128xf32>
    %23 = vector.broadcast %15 : vector<1x128xf32> to vector<128x128xf32>
    %24 = arith.subf %11, %23 : vector<128x128xf32>
    %cst_15 = arith.constant 9.99999974E-6 : f32
    %25 = vector.broadcast %cst_15 : f32 to vector<1x128xf32>
    %26 = arith.addf %22, %25 : vector<1x128xf32>
    %27 = math.rsqrt %26 : vector<1x128xf32>
    %28 = vector.broadcast %27 : vector<1x128xf32> to vector<128x128xf32>
    %29 = arith.mulf %24, %28 : vector<128x128xf32>
    %30 = vector.broadcast %2 : vector<1x128xf32> to vector<128x128xf32>
    %31 = arith.mulf %29, %30 : vector<128x128xf32>
    %32 = vector.broadcast %3 : vector<1x128xf32> to vector<128x128xf32>
    %33 = arith.addf %31, %32 : vector<128x128xf32>
    %cst_16 = arith.constant 0.000000e+00 : f32
    %34 = vector.broadcast %cst_16 : f32 to vector<128x128xf32>
    %35 = arith.maximumf %33, %34 : vector<128x128xf32>
    %c1_17 = arith.constant 1 : index
    %c0_18 = arith.constant 0 : index
    %c0_19 = arith.constant 0 : index
    %36 = vector.load %arg1[%c1_17, %c0_18, %c0_19] : memref<4x128x128xf32, #tpu.memory_space<vmem>>, vector<1x128x128xf32>
    %37 = vector.shape_cast %36 : vector<1x128x128xf32> to vector<128x128xf32>
    %cst_20 = arith.constant dense<0.000000e+00> : vector<128x128xf32>
    %38 = tpu.matmul %35, %37, %cst_20 {dimension_numbers = #tpu.dot_dimension_numbers<[1], [0], [0], [1], [0, 0, 1, 1], [], []>} : vector<128x128xf32>, vector<128x128xf32>, vector<128x128xf32> -> vector<128x128xf32>
    %39 = vector.broadcast %4 : vector<1x128xf32> to vector<128x128xf32>
    %40 = arith.addf %38, %39 : vector<128x128xf32>
    %cst_21 = arith.constant 0.000000e+00 : f32
    %41 = vector.broadcast %cst_21 : f32 to vector<128x128xf32>
    %42 = arith.maximumf %40, %41 : vector<128x128xf32>
    %c2_22 = arith.constant 2 : index
    %c0_23 = arith.constant 0 : index
    %c0_24 = arith.constant 0 : index
    %43 = vector.load %arg1[%c2_22, %c0_23, %c0_24] : memref<4x128x128xf32, #tpu.memory_space<vmem>>, vector<1x128x128xf32>
    %44 = vector.shape_cast %43 : vector<1x128x128xf32> to vector<128x128xf32>
    %cst_25 = arith.constant dense<0.000000e+00> : vector<128x128xf32>
    %45 = tpu.matmul %42, %44, %cst_25 {dimension_numbers = #tpu.dot_dimension_numbers<[1], [0], [0], [1], [0, 0, 1, 1], [], []>} : vector<128x128xf32>, vector<128x128xf32>, vector<128x128xf32> -> vector<128x128xf32>
    %46 = vector.broadcast %5 : vector<1x128xf32> to vector<128x128xf32>
    %47 = arith.addf %45, %46 : vector<128x128xf32>
    %cst_26 = arith.constant 0.000000e+00 : f32
    %48 = vector.broadcast %cst_26 : f32 to vector<128x128xf32>
    %49 = arith.maximumf %47, %48 : vector<128x128xf32>
    %c3_27 = arith.constant 3 : index
    %c0_28 = arith.constant 0 : index
    %c0_29 = arith.constant 0 : index
    %50 = vector.load %arg1[%c3_27, %c0_28, %c0_29] : memref<4x128x128xf32, #tpu.memory_space<vmem>>, vector<1x128x128xf32>
    %51 = vector.shape_cast %50 : vector<1x128x128xf32> to vector<128x128xf32>
    %cst_30 = arith.constant dense<0.000000e+00> : vector<128x128xf32>
    %52 = tpu.matmul %49, %51, %cst_30 {dimension_numbers = #tpu.dot_dimension_numbers<[1], [0], [0], [1], [0, 0, 1, 1], [], []>} : vector<128x128xf32>, vector<128x128xf32>, vector<128x128xf32> -> vector<128x128xf32>
    %53 = vector.broadcast %6 : vector<1x128xf32> to vector<128x128xf32>
    %54 = arith.addf %52, %53 : vector<128x128xf32>
    %55 = math.tanh %54 : vector<128x128xf32>
    %c0_31 = arith.constant 0 : index
    %c0_32 = arith.constant 0 : index
    %56 = vector.load %arg3[%c0_31, %c0_32] : memref<128x128xf32, #tpu.memory_space<vmem>>, vector<128x128xf32>
    tpu.vector_store %arg3[%c0_31, %c0_32], %55 {strides = array<i32>} : memref<128x128xf32, #tpu.memory_space<vmem>>, vector<128x128xf32>,
    return
  }
}

</mosaic_0001>

<llo_original>
// kernel: actor_forward.1
$region0: #{actor_forward.1}
  #allocation0 [shape = 'u32[]', space=smem, size = 0x4, offset = 0x4, fixed_abs, tag = 'smem constant byte address 0x4 - core index']
  #allocation1 [shape = 'u32[144,128]{1,0:T(1,128)}', space=vmem, size = 0x12000, scoped, tag = 'internal scratch']
  %s0 = inlined_call_operand.vmem [shape: f32[128,128], index: 0, kind: input, shape index: {}]
  %s1 = inlined_call_operand.hbm [shape: f32[4,128,128], index: 1, kind: input, shape index: {}]
  %s2 = inlined_call_operand.vmem [shape: f32[8,128], index: 2, kind: input, shape index: {}]
  %s3 = inlined_call_operand.vmem [shape: f32[128,128], index: 3, kind: output, shape index: {}]
  %s4 = sld [smem:[#allocation0]]
  $region26: #{actor_forward.1} parent=0
    _
  %s6 = ssub.s32 1, %s4
  %s7 = scalar_select 0, %s6, %s4
  $region1: #{actor_forward.1} parent=0
    #allocation2 [shape = 'u8[262144]{0}', space=vmem, size = 0x40000, scoped, tag = 'input window, operand 1, single buffered']
    #allocation3 [shape = 's32[1]{0}', space=sflag, size = 0x4, scoped, tag = 'scoped memory for actor_forward.1']
    %8 = vsyncpa [#allocation3], 0
    // Predicated region
    $region2: #{actor_forward.1} parent=1 // pred_check
      _
    $region3: #{actor_forward.1} parent=1 // pred_check_branch
      %10 = sbr.rel (0) target = $region5
    $region4: #{actor_forward.1} parent=1 // pred_region
      _
    $region5: #{actor_forward.1} parent=1 // pred_fallthru
      _
    // Predicated region
    $region6: #{actor_forward.1} parent=1 // pred_check
      _
    $region7: #{actor_forward.1} parent=1 // pred_check_branch
      %12 = sbr.rel (0) target = $region9
    $region8: #{actor_forward.1} parent=1 // pred_region
      %s14 = ssub.s32 8192, 8192
      %15 = vsyncadd [#allocation3], %s14
      %s16 = sshll.u32 [#allocation2], 4
      %s17 = int_to_ptr.vmem [resolvable:$true] %s16
      %22 = dma.hbm_to_vmem [thread:$0]  %s1, 8192, %s17, [#allocation3], 128, 128, 8
    $region9: #{actor_forward.1} parent=1 // pred_fallthru
      _
    // Predicated region
    $region10: #{actor_forward.1} parent=1 // pred_check
      _
    $region11: #{actor_forward.1} parent=1 // pred_check_branch
      %24 = sbr.rel (0) target = $region13
    $region12: #{actor_forward.1} parent=1 // pred_region
      _
    $region13: #{actor_forward.1} parent=1 // pred_fallthru
      _
    // Predicated region
    $region14: #{actor_forward.1} parent=1 // pred_check
      _
    $region15: #{actor_forward.1} parent=1 // pred_check_branch
      %26 = sbr.rel (0) target = $region17
    $region16: #{actor_forward.1} parent=1 // pred_region
      %27 = dma.done [#allocation3], 8192
    $region17: #{actor_forward.1} parent=1 // pred_fallthru
      _
    %v28 = vld [vmem:[%s0] sm:$0xff]
    %v29 = vld [vmem:[%s0 + $0x8] sm:$0xff]
    %v30 = vld [vmem:[%s0 + $0x10] sm:$0xff]
    %v31 = vld [vmem:[%s0 + $0x18] sm:$0xff]
    %v32 = vld [vmem:[%s0 + $0x20] sm:$0xff]
    %v33 = vld [vmem:[%s0 + $0x28] sm:$0xff]
    %v34 = vld [vmem:[%s0 + $0x30] sm:$0xff]
    %v35 = vld [vmem:[%s0 + $0x38] sm:$0xff]
    %v36 = vld [vmem:[%s0 + $0x40] sm:$0xff]
    %v37 = vld [vmem:[%s0 + $0x48] sm:$0xff]
    %v38 = vld [vmem:[%s0 + $0x50] sm:$0xff]
    %v39 = vld [vmem:[%s0 + $0x58] sm:$0xff]
    %v40 = vld [vmem:[%s0 + $0x60] sm:$0xff]
    %v41 = vld [vmem:[%s0 + $0x68] sm:$0xff]
    %v42 = vld [vmem:[%s0 + $0x70] sm:$0xff]
    %v43 = vld [vmem:[%s0 + $0x78] sm:$0xff]
    %v44 = vld [vmem:[%s2] sm:$0x1]
    %v45 = vld [vmem:[%s2 + $0x1] sm:$0x1]
    %v46 = vld [vmem:[%s2 + $0x2] sm:$0x1]
    %v47 = vld [vmem:[%s2 + $0x3] sm:$0x1]
    %v48 = vld [vmem:[%s2 + $0x4] sm:$0x1]
    %v49 = vld [vmem:[%s2 + $0x5] sm:$0x1]
    %v50 = vld [vmem:[#allocation2] sm:$0xff]
    %v51 = vld [vmem:[#allocation2 + $0x8] sm:$0xff]
    %v52 = vld [vmem:[#allocation2 + $0x10] sm:$0xff]
    %v53 = vld [vmem:[#allocation2 + $0x18] sm:$0xff]
    %v54 = vld [vmem:[#allocation2 + $0x20] sm:$0xff]
    %v55 = vld [vmem:[#allocation2 + $0x28] sm:$0xff]
    %v56 = vld [vmem:[#allocation2 + $0x30] sm:$0xff]
    %v57 = vld [vmem:[#allocation2 + $0x38] sm:$0xff]
    %v58 = vld [vmem:[#allocation2 + $0x40] sm:$0xff]
    %v59 = vld [vmem:[#allocation2 + $0x48] sm:$0xff]
    %v60 = vld [vmem:[#allocation2 + $0x50] sm:$0xff]
    %v61 = vld [vmem:[#allocation2 + $0x58] sm:$0xff]
    %v62 = vld [vmem:[#allocation2 + $0x60] sm:$0xff]
    %v63 = vld [vmem:[#allocation2 + $0x68] sm:$0xff]
    %v64 = vld [vmem:[#allocation2 + $0x70] sm:$0xff]
    %v65 = vld [vmem:[#allocation2 + $0x78] sm:$0xff]
    %v66 = vlaneseq
    %v67 = vshrl.u32 %v66, 7
    %v68 = vsub.s32 0, %v67
    %v69 = vrot.slane %v44, %v68
    %70 = vmatprep.subr.mxu0 0.0
    %71 = vmatpush1.msra.mxu0 %v50
    %72 = vmatprep.subr.mxu0 0.0
    %73 = vmatpush1.msra.mxu0 %v51
    %74 = vmatprep.subr.mxu0 0.0
    %75 = vmatpush1.msra.mxu0 %v52
    %76 = vmatprep.subr.mxu0 0.0
    %77 = vmatpush1.msra.mxu0 %v53
    %78 = vmatprep.subr.mxu0 0.0
    %79 = vmatpush1.msra.mxu0 %v54
    %80 = vmatprep.subr.mxu0 0.0
    %81 = vmatpush1.msra.mxu0 %v55
    %82 = vmatprep.subr.mxu0 0.0
    %83 = vmatpush1.msra.mxu0 %v56
    %84 = vmatprep.subr.mxu0 0.0
    %85 = vmatpush1.msra.mxu0 %v57
    %86 = vmatprep.subr.mxu0 0.0
    %87 = vmatpush1.msra.mxu0 %v58
    %88 = vmatprep.subr.mxu0 0.0
    %89 = vmatpush1.msra.mxu0 %v59
    %90 = vmatprep.subr.mxu0 0.0
    %91 = vmatpush1.msra.mxu0 %v60
    %92 = vmatprep.subr.mxu0 0.0
    %93 = vmatpush1.msra.mxu0 %v61
    %94 = vmatprep.subr.mxu0 0.0
    %95 = vmatpush1.msra.mxu0 %v62
    %96 = vmatprep.subr.mxu0 0.0
    %97 = vmatpush1.msra.mxu0 %v63
    %98 = vmatprep.subr.mxu0 0.0
    %99 = vmatpush1.msra.mxu0 %v64
    %100 = vmatprep.subr.mxu0 0.0
    %101 = vmatpush1.msra.mxu0 %v65
    %102 = vmatprep.subr.mxu0 0.0
    %103 = vmatpush1.msra.mxu0 0.0
    %104 = vmatprep.subr.mxu0 0.0
    %105 = vmatpush1.msra.mxu0 0.0
    %106 = vmatprep.subr.mxu0 0.0
    %107 = vmatpush1.msra.mxu0 0.0
    %108 = vmatprep.subr.mxu0 0.0
    %109 = vmatpush1.msra.mxu0 0.0
    %110 = vmatprep.subr.mxu0 0.0
    %111 = vmatpush1.msra.mxu0 0.0
    %112 = vmatprep.subr.mxu0 0.0
    %113 = vmatpush1.msra.mxu0 0.0
    %114 = vmatprep.subr.mxu0 0.0
    %115 = vmatpush1.msra.mxu0 0.0
    %116 = vmatprep.subr.mxu0 0.0
    %117 = vmatpush1.msra.mxu0 0.0
    %118 = vmatprep.subr.mxu0 0.0
    %119 = vmatpush1.msra.mxu0 0.0
    %120 = vmatprep.subr.mxu0 0.0
    %121 = vmatpush1.msra.mxu0 0.0
    %122 = vmatprep.subr.mxu0 0.0
    %123 = vmatpush1.msra.mxu0 0.0
    %124 = vmatprep.subr.mxu0 0.0
    %125 = vmatpush1.msra.mxu0 0.0
    %126 = vmatprep.subr.mxu0 0.0
    %127 = vmatpush1.msra.mxu0 0.0
    %128 = vmatprep.subr.mxu0 0.0
    %129 = vmatpush1.msra.mxu0 0.0
    %130 = vmatprep.subr.mxu0 0.0
    %131 = vmatpush1.msra.mxu0 0.0
    %132 = vmatprep.subr.mxu0 0.0
    %133 = vmatpush1.msra.mxu0 0.0
    %134 = vmatprep.mubr.f32.mxu0 0.0
    %135 = vmatmul.mubr.f32.gmra.mrb[0].mxu0 %v28
    %v136 = vpop.f32.mrb[0].mxu0
    %v137 = vadd.f32 %v69, %v136
    %v138 = vpop.f32.mrb[0].mxu0
    %139 = vmatprep.mubr.f32.mxu0 0.0
    %140 = vmatmul.mubr.f32.gmra.mrb[0].mxu0 %v29
    %v141 = vpop.f32.mrb[0].mxu0
    %v142 = vadd.f32 %v69, %v141
    %v143 = vpop.f32.mrb[0].mxu0
    %144 = vmatprep.mubr.f32.mxu0 0.0
    %145 = vmatmul.mubr.f32.gmra.mrb[0].mxu0 %v30
    %v146 = vpop.f32.mrb[0].mxu0
    %v147 = vadd.f32 %v69, %v146
    %v148 = vpop.f32.mrb[0].mxu0
    %149 = vmatprep.mubr.f32.mxu0 0.0
    %150 = vmatmul.mubr.f32.gmra.mrb[0].mxu0 %v31
    %v151 = vpop.f32.mrb[0].mxu0
    %v152 = vadd.f32 %v69, %v151
    %v153 = vpop.f32.mrb[0].mxu0
    %154 = vmatprep.mubr.f32.mxu0 0.0
    %155 = vmatmul.mubr.f32.gmra.mrb[0].mxu0 %v32
    %v156 = vpop.f32.mrb[0].mxu0
    %v157 = vadd.f32 %v69, %v156
    %v158 = vpop.f32.mrb[0].mxu0
    %159 = vmatprep.mubr.f32.mxu0 0.0
    %160 = vmatmul.mubr.f32.gmra.mrb[0].mxu0 %v33
    %v161 = vpop.f32.mrb[0].mxu0
    %v162 = vadd.f32 %v69, %v161
    %v163 = vpop.f32.mrb[0].mxu0
    %164 = vmatprep.mubr.f32.mxu0 0.0
    %165 = vmatmul.mubr.f32.gmra.mrb[0].mxu0 %v34
    %v166 = vpop.f32.mrb[0].mxu0
    %v167 = vadd.f32 %v69, %v166
    %v168 = vpop.f32.mrb[0].mxu0
    %169 = vmatprep.mubr.f32.mxu0 0.0
    %170 = vmatmul.mubr.f32.gmra.mrb[0].mxu0 %v35
    %v171 = vpop.f32.mrb[0].mxu0
    %v172 = vadd.f32 %v69, %v171
    %v173 = vpop.f32.mrb[0].mxu0
    %174 = vmatprep.mubr.f32.mxu0 0.0
    %175 = vmatmul.mubr.f32.gmra.mrb[0].mxu0 %v36
    %v176 = vpop.f32.mrb[0].mxu0
    %v177 = vadd.f32 %v69, %v176
    %v178 = vpop.f32.mrb[0].mxu0
    %179 = vmatprep.mubr.f32.mxu0 0.0
    %180 = vmatmul.mubr.f32.gmra.mrb[0].mxu0 %v37
    %v181 = vpop.f32.mrb[0].mxu0
    %v182 = vadd.f32 %v69, %v181
    %v183 = vpop.f32.mrb[0].mxu0
    %184 = vmatprep.mubr.f32.mxu0 0.0
    %185 = vmatmul.mubr.f32.gmra.mrb[0].mxu0 %v38
    %v186 = vpop.f32.mrb[0].mxu0
    %v187 = vadd.f32 %v69, %v186
    %v188 = vpop.f32.mrb[0].mxu0
    %189 = vmatprep.mubr.f32.mxu0 0.0
    %190 = vmatmul.mubr.f32.gmra.mrb[0].mxu0 %v39
    %v191 = vpop.f32.mrb[0].mxu0
    %v192 = vadd.f32 %v69, %v191
    %v193 = vpop.f32.mrb[0].mxu0
    %194 = vmatprep.mubr.f32.mxu0 0.0
    %195 = vmatmul.mubr.f32.gmra.mrb[0].mxu0 %v40
    %v196 = vpop.f32.mrb[0].mxu0
    %v197 = vadd.f32 %v69, %v196
    %v198 = vpop.f32.mrb[0].mxu0
    %199 = vmatprep.mubr.f32.mxu0 0.0
    %200 = vmatmul.mubr.f32.gmra.mrb[0].mxu0 %v41
    %v201 = vpop.f32.mrb[0].mxu0
    %v202 = vadd.f32 %v69, %v201
    %v203 = vpop.f32.mrb[0].mxu0
    %204 = vmatprep.mubr.f32.mxu0 0.0
    %205 = vmatmul.mubr.f32.gmra.mrb[0].mxu0 %v42
    %v206 = vpop.f32.mrb[0].mxu0
    %v207 = vadd.f32 %v69, %v206
    %v208 = vpop.f32.mrb[0].mxu0
    %209 = vmatprep.mubr.f32.mxu0 0.0
    %210 = vmatmul.mubr.f32.gmra.mrb[0].mxu0 %v43
    %v211 = vpop.f32.mrb[0].mxu0
    %v212 = vadd.f32 %v69, %v211
    %v213 = vpop.f32.mrb[0].mxu0
    %214 = vdwg.mxu0
    %v215 = vadd.f32 %v137, %v142
    %v216 = vadd.f32 %v215, %v147
    %v217 = vadd.f32 %v216, %v152
    %v218 = vadd.f32 %v217, %v157
    %v219 = vadd.f32 %v218, %v162
    %v220 = vadd.f32 %v219, %v167
    %v221 = vadd.f32 %v220, %v172
    %v222 = vadd.f32 %v221, %v177
    %v223 = vadd.f32 %v222, %v182
    %v224 = vadd.f32 %v223, %v187
    %v225 = vadd.f32 %v224, %v192
    %v226 = vadd.f32 %v225, %v197
    %v227 = vadd.f32 %v226, %v202
    %v228 = vadd.f32 %v227, %v207
    %v229 = vadd.f32 %v228, %v212
    %v230 = vrot.slane %v229, 4
    %v231 = vadd.f32 %v229, %v230
    %v232 = vrot.slane %v231, 2
    %v233 = vadd.f32 %v231, %v232
    %v234 = vrot.slane %v233, 1
    %v235 = vadd.f32 %v233, %v234
    %v236 = vrcp.pop 128.0
    %v237 = vmul.f32 %v235, %v236
    %v238 = vmul.f32 %v137, %v137
    %v239 = vmul.f32 %v142, %v142
    %v240 = vmul.f32 %v147, %v147
    %v241 = vmul.f32 %v152, %v152
    %v242 = vmul.f32 %v157, %v157
    %v243 = vmul.f32 %v162, %v162
    %v244 = vmul.f32 %v167, %v167
    %v245 = vmul.f32 %v172, %v172
    %v246 = vmul.f32 %v177, %v177
    %v247 = vmul.f32 %v182, %v182
    %v248 = vmul.f32 %v187, %v187
    %v249 = vmul.f32 %v192, %v192
    %v250 = vmul.f32 %v197, %v197
    %v251 = vmul.f32 %v202, %v202
    %v252 = vmul.f32 %v207, %v207
    %v253 = vmul.f32 %v212, %v212
    %v254 = vadd.f32 %v238, %v239
    %v255 = vadd.f32 %v254, %v240
    %v256 = vadd.f32 %v255, %v241
    %v257 = vadd.f32 %v256, %v242
    %v258 = vadd.f32 %v257, %v243
    %v259 = vadd.f32 %v258, %v244
    %v260 = vadd.f32 %v259, %v245
    %v261 = vadd.f32 %v260, %v246
    %v262 = vadd.f32 %v261, %v247
    %v263 = vadd.f32 %v262, %v248
    %v264 = vadd.f32 %v263, %v249
    %v265 = vadd.f32 %v264, %v250
    %v266 = vadd.f32 %v265, %v251
    %v267 = vadd.f32 %v266, %v252
    %v268 = vadd.f32 %v267, %v253
    %v269 = vrot.slane %v268, 4
    %v270 = vadd.f32 %v268, %v269
    %v271 = vrot.slane %v270, 2
    %v272 = vadd.f32 %v270, %v271
    %v273 = vrot.slane %v272, 1
    %v274 = vadd.f32 %v272, %v273
    %v275 = vmul.f32 %v274, %v236
    %v276 = vmul.f32 %v237, %v237
    %v277 = vsub.f32 %v275, %v276
    %v278 = vsub.f32 %v137, %v237
    %v279 = vsub.f32 %v142, %v237
    %v280 = vsub.f32 %v147, %v237
    %v281 = vsub.f32 %v152, %v237
    %v282 = vsub.f32 %v157, %v237
    %v283 = vsub.f32 %v162, %v237
    %v284 = vsub.f32 %v167, %v237
    %v285 = vsub.f32 %v172, %v237
    %v286 = vsub.f32 %v177, %v237
    %v287 = vsub.f32 %v182, %v237
    %v288 = vsub.f32 %v187, %v237
    %v289 = vsub.f32 %v192, %v237
    %v290 = vsub.f32 %v197, %v237
    %v291 = vsub.f32 %v202, %v237
    %v292 = vsub.f32 %v207, %v237
    %v293 = vsub.f32 %v212, %v237
    %v294 = vadd.f32 %v277, 1e-05
    %v295 = vrsqrt.pop %v294
    %v296 = vmul.f32 %v278, %v295
    %v297 = vmul.f32 %v279, %v295
    %v298 = vmul.f32 %v280, %v295
    %v299 = vmul.f32 %v281, %v295
    %v300 = vmul.f32 %v282, %v295
    %v301 = vmul.f32 %v283, %v295
    %v302 = vmul.f32 %v284, %v295
    %v303 = vmul.f32 %v285, %v295
    %v304 = vmul.f32 %v286, %v295
    %v305 = vmul.f32 %v287, %v295
    %v306 = vmul.f32 %v288, %v295
    %v307 = vmul.f32 %v289, %v295
    %v308 = vmul.f32 %v290, %v295
    %v309 = vmul.f32 %v291, %v295
    %v310 = vmul.f32 %v292, %v295
    %v311 = vmul.f32 %v293, %v295
    %v312 = vlaneseq
    %v313 = vshrl.u32 %v312, 7
    %v314 = vsub.s32 0, %v313
    %v315 = vrot.slane %v45, %v314
    %v316 = vmul.f32 %v296, %v315
    %v317 = vmul.f32 %v297, %v315
    %v318 = vmul.f32 %v298, %v315
    %v319 = vmul.f32 %v299, %v315
    %v320 = vmul.f32 %v300, %v315
    %v321 = vmul.f32 %v301, %v315
    %v322 = vmul.f32 %v302, %v315
    %v323 = vmul.f32 %v303, %v315
    %v324 = vmul.f32 %v304, %v315
    %v325 = vmul.f32 %v305, %v315
    %v326 = vmul.f32 %v306, %v315
    %v327 = vmul.f32 %v307, %v315
    %v328 = vmul.f32 %v308, %v315
    %v329 = vmul.f32 %v309, %v315
    %v330 = vmul.f32 %v310, %v315
    %v331 = vmul.f32 %v311, %v315
    %v332 = vlaneseq
    %v333 = vshrl.u32 %v332, 7
    %v334 = vsub.s32 0, %v333
    %v335 = vrot.slane %v46, %v334
    %v336 = vadd.f32 %v316, %v335
    %v337 = vadd.f32 %v317, %v335
    %v338 = vadd.f32 %v318, %v335
    %v339 = vadd.f32 %v319, %v335
    %v340 = vadd.f32 %v320, %v335
    %v341 = vadd.f32 %v321, %v335
    %v342 = vadd.f32 %v322, %v335
    %v343 = vadd.f32 %v323, %v335
    %v344 = vadd.f32 %v324, %v335
    %v345 = vadd.f32 %v325, %v335
    %v346 = vadd.f32 %v326, %v335
    %v347 = vadd.f32 %v327, %v335
    %v348 = vadd.f32 %v328, %v335
    %v349 = vadd.f32 %v329, %v335
    %v350 = vadd.f32 %v330, %v335
    %v351 = vadd.f32 %v331, %v335
    %v352 = vmax.f32 %v336, 0.0
    %v353 = vmax.f32 %v337, 0.0
    %v354 = vmax.f32 %v338, 0.0
    %v355 = vmax.f32 %v339, 0.0
    %v356 = vmax.f32 %v340, 0.0
    %v357 = vmax.f32 %v341, 0.0
    %v358 = vmax.f32 %v342, 0.0
    %v359 = vmax.f32 %v343, 0.0
    %v360 = vmax.f32 %v344, 0.0
    %v361 = vmax.f32 %v345, 0.0
    %v362 = vmax.f32 %v346, 0.0
    %v363 = vmax.f32 %v347, 0.0
    %v364 = vmax.f32 %v348, 0.0
    %v365 = vmax.f32 %v349, 0.0
    %v366 = vmax.f32 %v350, 0.0
    %v367 = vmax.f32 %v351, 0.0
    %s368 = scalar_lea.vmem [#allocation2], 128
    %v369 = vld [vmem:[%s368] sm:$0xff]
    %v370 = vld [vmem:[%s368 + $0x8] sm:$0xff]
    %v371 = vld [vmem:[%s368 + $0x10] sm:$0xff]
    %v372 = vld [vmem:[%s368 + $0x18] sm:$0xff]
    %v373 = vld [vmem:[%s368 + $0x20] sm:$0xff]
    %v374 = vld [vmem:[%s368 + $0x28] sm:$0xff]
    %v375 = vld [vmem:[%s368 + $0x30] sm:$0xff]
    %v376 = vld [vmem:[%s368 + $0x38] sm:$0xff]
    %v377 = vld [vmem:[%s368 + $0x40] sm:$0xff]
    %v378 = vld [vmem:[%s368 + $0x48] sm:$0xff]
    %v379 = vld [vmem:[%s368 + $0x50] sm:$0xff]
    %v380 = vld [vmem:[%s368 + $0x58] sm:$0xff]
    %v381 = vld [vmem:[%s368 + $0x60] sm:$0xff]
    %v382 = vld [vmem:[%s368 + $0x68] sm:$0xff]
    %v383 = vld [vmem:[%s368 + $0x70] sm:$0xff]
    %v384 = vld [vmem:[%s368 + $0x78] sm:$0xff]
    %v385 = vlaneseq
    %v386 = vshrl.u32 %v385, 7
    %v387 = vsub.s32 0, %v386
    %v388 = vrot.slane %v47, %v387
    %389 = vmatprep.subr.mxu0 0.0
    %390 = vmatpush1.msra.mxu0 %v369
    %391 = vmatprep.subr.mxu0 0.0
    %392 = vmatpush1.msra.mxu0 %v370
    %393 = vmatprep.subr.mxu0 0.0
    %394 = vmatpush1.msra.mxu0 %v371
    %395 = vmatprep.subr.mxu0 0.0
    %396 = vmatpush1.msra.mxu0 %v372
    %397 = vmatprep.subr.mxu0 0.0
    %398 = vmatpush1.msra.mxu0 %v373
    %399 = vmatprep.subr.mxu0 0.0
    %400 = vmatpush1.msra.mxu0 %v374
    %401 = vmatprep.subr.mxu0 0.0
    %402 = vmatpush1.msra.mxu0 %v375
    %403 = vmatprep.subr.mxu0 0.0
    %404 = vmatpush1.msra.mxu0 %v376
    %405 = vmatprep.subr.mxu0 0.0
    %406 = vmatpush1.msra.mxu0 %v377
    %407 = vmatprep.subr.mxu0 0.0
    %408 = vmatpush1.msra.mxu0 %v378
    %409 = vmatprep.subr.mxu0 0.0
    %410 = vmatpush1.msra.mxu0 %v379
    %411 = vmatprep.subr.mxu0 0.0
    %412 = vmatpush1.msra.mxu0 %v380
    %413 = vmatprep.subr.mxu0 0.0
    %414 = vmatpush1.msra.mxu0 %v381
    %415 = vmatprep.subr.mxu0 0.0
    %416 = vmatpush1.msra.mxu0 %v382
    %417 = vmatprep.subr.mxu0 0.0
    %418 = vmatpush1.msra.mxu0 %v383
    %419 = vmatprep.subr.mxu0 0.0
    %420 = vmatpush1.msra.mxu0 %v384
    %421 = vmatprep.subr.mxu0 0.0
    %422 = vmatpush1.msra.mxu0 0.0
    %423 = vmatprep.subr.mxu0 0.0
    %424 = vmatpush1.msra.mxu0 0.0
    %425 = vmatprep.subr.mxu0 0.0
    %426 = vmatpush1.msra.mxu0 0.0
    %427 = vmatprep.subr.mxu0 0.0
    %428 = vmatpush1.msra.mxu0 0.0
    %429 = vmatprep.subr.mxu0 0.0
    %430 = vmatpush1.msra.mxu0 0.0
    %431 = vmatprep.subr.mxu0 0.0
    %432 = vmatpush1.msra.mxu0 0.0
    %433 = vmatprep.subr.mxu0 0.0
    %434 = vmatpush1.msra.mxu0 0.0
    %435 = vmatprep.subr.mxu0 0.0
    %436 = vmatpush1.msra.mxu0 0.0
    %437 = vmatprep.subr.mxu0 0.0
    %438 = vmatpush1.msra.mxu0 0.0
    %439 = vmatprep.subr.mxu0 0.0
    %440 = vmatpush1.msra.mxu0 0.0
    %441 = vmatprep.subr.mxu0 0.0
    %442 = vmatpush1.msra.mxu0 0.0
    %443 = vmatprep.subr.mxu0 0.0
    %444 = vmatpush1.msra.mxu0 0.0
    %445 = vmatprep.subr.mxu0 0.0
    %446 = vmatpush1.msra.mxu0 0.0
    %447 = vmatprep.subr.mxu0 0.0
    %448 = vmatpush1.msra.mxu0 0.0
    %449 = vmatprep.subr.mxu0 0.0
    %450 = vmatpush1.msra.mxu0 0.0
    %451 = vmatprep.subr.mxu0 0.0
    %452 = vmatpush1.msra.mxu0 0.0
    %453 = vmatprep.mubr.f32.mxu0 0.0
    %454 = vmatmul.mubr.f32.gmra.mrb[0].mxu0 %v352
    %v455 = vpop.f32.mrb[0].mxu0
    %v456 = vadd.f32 %v388, %v455
    %v457 = vpop.f32.mrb[0].mxu0
    %458 = vmatprep.mubr.f32.mxu0 0.0
    %459 = vmatmul.mubr.f32.gmra.mrb[0].mxu0 %v353
    %v460 = vpop.f32.mrb[0].mxu0
    %v461 = vadd.f32 %v388, %v460
    %v462 = vpop.f32.mrb[0].mxu0
    %463 = vmatprep.mubr.f32.mxu0 0.0
    %464 = vmatmul.mubr.f32.gmra.mrb[0].mxu0 %v354
    %v465 = vpop.f32.mrb[0].mxu0
    %v466 = vadd.f32 %v388, %v465
    %v467 = vpop.f32.mrb[0].mxu0
    %468 = vmatprep.mubr.f32.mxu0 0.0
    %469 = vmatmul.mubr.f32.gmra.mrb[0].mxu0 %v355
    %v470 = vpop.f32.mrb[0].mxu0
    %v471 = vadd.f32 %v388, %v470
    %v472 = vpop.f32.mrb[0].mxu0
    %473 = vmatprep.mubr.f32.mxu0 0.0
    %474 = vmatmul.mubr.f32.gmra.mrb[0].mxu0 %v356
    %v475 = vpop.f32.mrb[0].mxu0
    %v476 = vadd.f32 %v388, %v475
    %v477 = vpop.f32.mrb[0].mxu0
    %478 = vmatprep.mubr.f32.mxu0 0.0
    %479 = vmatmul.mubr.f32.gmra.mrb[0].mxu0 %v357
    %v480 = vpop.f32.mrb[0].mxu0
    %v481 = vadd.f32 %v388, %v480
    %v482 = vpop.f32.mrb[0].mxu0
    %483 = vmatprep.mubr.f32.mxu0 0.0
    %484 = vmatmul.mubr.f32.gmra.mrb[0].mxu0 %v358
    %v485 = vpop.f32.mrb[0].mxu0
    %v486 = vadd.f32 %v388, %v485
    %v487 = vpop.f32.mrb[0].mxu0
    %488 = vmatprep.mubr.f32.mxu0 0.0
    %489 = vmatmul.mubr.f32.gmra.mrb[0].mxu0 %v359
    %v490 = vpop.f32.mrb[0].mxu0
    %v491 = vadd.f32 %v388, %v490
    %v492 = vpop.f32.mrb[0].mxu0
    %493 = vmatprep.mubr.f32.mxu0 0.0
    %494 = vmatmul.mubr.f32.gmra.mrb[0].mxu0 %v360
    %v495 = vpop.f32.mrb[0].mxu0
    %v496 = vadd.f32 %v388, %v495
    %v497 = vpop.f32.mrb[0].mxu0
    %498 = vmatprep.mubr.f32.mxu0 0.0
    %499 = vmatmul.mubr.f32.gmra.mrb[0].mxu0 %v361
    %v500 = vpop.f32.mrb[0].mxu0
    %v501 = vadd.f32 %v388, %v500
    %v502 = vpop.f32.mrb[0].mxu0
    %503 = vmatprep.mubr.f32.mxu0 0.0
    %504 = vmatmul.mubr.f32.gmra.mrb[0].mxu0 %v362
    %v505 = vpop.f32.mrb[0].mxu0
    %v506 = vadd.f32 %v388, %v505
    %v507 = vpop.f32.mrb[0].mxu0
    %508 = vmatprep.mubr.f32.mxu0 0.0
    %509 = vmatmul.mubr.f32.gmra.mrb[0].mxu0 %v363
    %v510 = vpop.f32.mrb[0].mxu0
    %v511 = vadd.f32 %v388, %v510
    %v512 = vpop.f32.mrb[0].mxu0
    %513 = vmatprep.mubr.f32.mxu0 0.0
    %514 = vmatmul.mubr.f32.gmra.mrb[0].mxu0 %v364
    %v515 = vpop.f32.mrb[0].mxu0
    %v516 = vadd.f32 %v388, %v515
    %v517 = vpop.f32.mrb[0].mxu0
    %518 = vmatprep.mubr.f32.mxu0 0.0
    %519 = vmatmul.mubr.f32.gmra.mrb[0].mxu0 %v365
    %v520 = vpop.f32.mrb[0].mxu0
    %v521 = vadd.f32 %v388, %v520
    %v522 = vpop.f32.mrb[0].mxu0
    %523 = vmatprep.mubr.f32.mxu0 0.0
    %524 = vmatmul.mubr.f32.gmra.mrb[0].mxu0 %v366
    %v525 = vpop.f32.mrb[0].mxu0
    %v526 = vadd.f32 %v388, %v525
    %v527 = vpop.f32.mrb[0].mxu0
    %528 = vmatprep.mubr.f32.mxu0 0.0
    %529 = vmatmul.mubr.f32.gmra.mrb[0].mxu0 %v367
    %v530 = vpop.f32.mrb[0].mxu0
    %v531 = vadd.f32 %v388, %v530
    %v532 = vpop.f32.mrb[0].mxu0
    %533 = vdwg.mxu0
    %v534 = vmax.f32 %v456, 0.0
    %v535 = vmax.f32 %v461, 0.0
    %v536 = vmax.f32 %v466, 0.0
    %v537 = vmax.f32 %v471, 0.0
    %v538 = vmax.f32 %v476, 0.0
    %v539 = vmax.f32 %v481, 0.0
    %v540 = vmax.f32 %v486, 0.0
    %v541 = vmax.f32 %v491, 0.0
    %v542 = vmax.f32 %v496, 0.0
    %v543 = vmax.f32 %v501, 0.0
    %v544 = vmax.f32 %v506, 0.0
    %v545 = vmax.f32 %v511, 0.0
    %v546 = vmax.f32 %v516, 0.0
    %v547 = vmax.f32 %v521, 0.0
    %v548 = vmax.f32 %v526, 0.0
    %v549 = vmax.f32 %v531, 0.0
    %s550 = scalar_lea.vmem [#allocation2], 256
    %v551 = vld [vmem:[%s550] sm:$0xff]
    %v552 = vld [vmem:[%s550 + $0x8] sm:$0xff]
    %v553 = vld [vmem:[%s550 + $0x10] sm:$0xff]
    %v554 = vld [vmem:[%s550 + $0x18] sm:$0xff]
    %v555 = vld [vmem:[%s550 + $0x20] sm:$0xff]
    %v556 = vld [vmem:[%s550 + $0x28] sm:$0xff]
    %v557 = vld [vmem:[%s550 + $0x30] sm:$0xff]
    %v558 = vld [vmem:[%s550 + $0x38] sm:$0xff]
    %v559 = vld [vmem:[%s550 + $0x40] sm:$0xff]
    %v560 = vld [vmem:[%s550 + $0x48] sm:$0xff]
    %v561 = vld [vmem:[%s550 + $0x50] sm:$0xff]
    %v562 = vld [vmem:[%s550 + $0x58] sm:$0xff]
    %v563 = vld [vmem:[%s550 + $0x60] sm:$0xff]
    %v564 = vld [vmem:[%s550 + $0x68] sm:$0xff]
    %v565 = vld [vmem:[%s550 + $0x70] sm:$0xff]
    %v566 = vld [vmem:[%s550 + $0x78] sm:$0xff]
    %v567 = vlaneseq
    %v568 = vshrl.u32 %v567, 7
    %v569 = vsub.s32 0, %v568
    %v570 = vrot.slane %v48, %v569
    %571 = vmatprep.subr.mxu0 0.0
    %572 = vmatpush1.msra.mxu0 %v551
    %573 = vmatprep.subr.mxu0 0.0
    %574 = vmatpush1.msra.mxu0 %v552
    %575 = vmatprep.subr.mxu0 0.0
    %576 = vmatpush1.msra.mxu0 %v553
    %577 = vmatprep.subr.mxu0 0.0
    %578 = vmatpush1.msra.mxu0 %v554
    %579 = vmatprep.subr.mxu0 0.0
    %580 = vmatpush1.msra.mxu0 %v555
    %581 = vmatprep.subr.mxu0 0.0
    %582 = vmatpush1.msra.mxu0 %v556
    %583 = vmatprep.subr.mxu0 0.0
    %584 = vmatpush1.msra.mxu0 %v557
    %585 = vmatprep.subr.mxu0 0.0
    %586 = vmatpush1.msra.mxu0 %v558
    %587 = vmatprep.subr.mxu0 0.0
    %588 = vmatpush1.msra.mxu0 %v559
    %589 = vmatprep.subr.mxu0 0.0
    %590 = vmatpush1.msra.mxu0 %v560
    %591 = vmatprep.subr.mxu0 0.0
    %592 = vmatpush1.msra.mxu0 %v561
    %593 = vmatprep.subr.mxu0 0.0
    %594 = vmatpush1.msra.mxu0 %v562
    %595 = vmatprep.subr.mxu0 0.0
    %596 = vmatpush1.msra.mxu0 %v563
    %597 = vmatprep.subr.mxu0 0.0
    %598 = vmatpush1.msra.mxu0 %v564
    %599 = vmatprep.subr.mxu0 0.0
    %600 = vmatpush1.msra.mxu0 %v565
    %601 = vmatprep.subr.mxu0 0.0
    %602 = vmatpush1.msra.mxu0 %v566
    %603 = vmatprep.subr.mxu0 0.0
    %604 = vmatpush1.msra.mxu0 0.0
    %605 = vmatprep.subr.mxu0 0.0
    %606 = vmatpush1.msra.mxu0 0.0
    %607 = vmatprep.subr.mxu0 0.0
    %608 = vmatpush1.msra.mxu0 0.0
    %609 = vmatprep.subr.mxu0 0.0
    %610 = vmatpush1.msra.mxu0 0.0
    %611 = vmatprep.subr.mxu0 0.0
    %612 = vmatpush1.msra.mxu0 0.0
    %613 = vmatprep.subr.mxu0 0.0
    %614 = vmatpush1.msra.mxu0 0.0
    %615 = vmatprep.subr.mxu0 0.0
    %616 = vmatpush1.msra.mxu0 0.0
    %617 = vmatprep.subr.mxu0 0.0
    %618 = vmatpush1.msra.mxu0 0.0
    %619 = vmatprep.subr.mxu0 0.0
    %620 = vmatpush1.msra.mxu0 0.0
    %621 = vmatprep.subr.mxu0 0.0
    %622 = vmatpush1.msra.mxu0 0.0
    %623 = vmatprep.subr.mxu0 0.0
    %624 = vmatpush1.msra.mxu0 0.0
    %625 = vmatprep.subr.mxu0 0.0
    %626 = vmatpush1.msra.mxu0 0.0
    %627 = vmatprep.subr.mxu0 0.0
    %628 = vmatpush1.msra.mxu0 0.0
    %629 = vmatprep.subr.mxu0 0.0
    %630 = vmatpush1.msra.mxu0 0.0
    %631 = vmatprep.subr.mxu0 0.0
    %632 = vmatpush1.msra.mxu0 0.0
    %633 = vmatprep.subr.mxu0 0.0
    %634 = vmatpush1.msra.mxu0 0.0
    %635 = vmatprep.mubr.f32.mxu0 0.0
    %636 = vmatmul.mubr.f32.gmra.mrb[0].mxu0 %v534
    %v637 = vpop.f32.mrb[0].mxu0
    %v638 = vadd.f32 %v570, %v637
    %v639 = vpop.f32.mrb[0].mxu0
    %640 = vmatprep.mubr.f32.mxu0 0.0
    %641 = vmatmul.mubr.f32.gmra.mrb[0].mxu0 %v535
    %v642 = vpop.f32.mrb[0].mxu0
    %v643 = vadd.f32 %v570, %v642
    %v644 = vpop.f32.mrb[0].mxu0
    %645 = vmatprep.mubr.f32.mxu0 0.0
    %646 = vmatmul.mubr.f32.gmra.mrb[0].mxu0 %v536
    %v647 = vpop.f32.mrb[0].mxu0
    %v648 = vadd.f32 %v570, %v647
    %v649 = vpop.f32.mrb[0].mxu0
    %650 = vmatprep.mubr.f32.mxu0 0.0
    %651 = vmatmul.mubr.f32.gmra.mrb[0].mxu0 %v537
    %v652 = vpop.f32.mrb[0].mxu0
    %v653 = vadd.f32 %v570, %v652
    %v654 = vpop.f32.mrb[0].mxu0
    %655 = vmatprep.mubr.f32.mxu0 0.0
    %656 = vmatmul.mubr.f32.gmra.mrb[0].mxu0 %v538
    %v657 = vpop.f32.mrb[0].mxu0
    %v658 = vadd.f32 %v570, %v657
    %v659 = vpop.f32.mrb[0].mxu0
    %660 = vmatprep.mubr.f32.mxu0 0.0
    %661 = vmatmul.mubr.f32.gmra.mrb[0].mxu0 %v539
    %v662 = vpop.f32.mrb[0].mxu0
    %v663 = vadd.f32 %v570, %v662
    %v664 = vpop.f32.mrb[0].mxu0
    %665 = vmatprep.mubr.f32.mxu0 0.0
    %666 = vmatmul.mubr.f32.gmra.mrb[0].mxu0 %v540
    %v667 = vpop.f32.mrb[0].mxu0
    %v668 = vadd.f32 %v570, %v667
    %v669 = vpop.f32.mrb[0].mxu0
    %670 = vmatprep.mubr.f32.mxu0 0.0
    %671 = vmatmul.mubr.f32.gmra.mrb[0].mxu0 %v541
    %v672 = vpop.f32.mrb[0].mxu0
    %v673 = vadd.f32 %v570, %v672
    %v674 = vpop.f32.mrb[0].mxu0
    %675 = vmatprep.mubr.f32.mxu0 0.0
    %676 = vmatmul.mubr.f32.gmra.mrb[0].mxu0 %v542
    %v677 = vpop.f32.mrb[0].mxu0
    %v678 = vadd.f32 %v570, %v677
    %v679 = vpop.f32.mrb[0].mxu0
    %680 = vmatprep.mubr.f32.mxu0 0.0
    %681 = vmatmul.mubr.f32.gmra.mrb[0].mxu0 %v543
    %v682 = vpop.f32.mrb[0].mxu0
    %v683 = vadd.f32 %v570, %v682
    %v684 = vpop.f32.mrb[0].mxu0
    %685 = vmatprep.mubr.f32.mxu0 0.0
    %686 = vmatmul.mubr.f32.gmra.mrb[0].mxu0 %v544
    %v687 = vpop.f32.mrb[0].mxu0
    %v688 = vadd.f32 %v570, %v687
    %v689 = vpop.f32.mrb[0].mxu0
    %690 = vmatprep.mubr.f32.mxu0 0.0
    %691 = vmatmul.mubr.f32.gmra.mrb[0].mxu0 %v545
    %v692 = vpop.f32.mrb[0].mxu0
    %v693 = vadd.f32 %v570, %v692
    %v694 = vpop.f32.mrb[0].mxu0
    %695 = vmatprep.mubr.f32.mxu0 0.0
    %696 = vmatmul.mubr.f32.gmra.mrb[0].mxu0 %v546
    %v697 = vpop.f32.mrb[0].mxu0
    %v698 = vadd.f32 %v570, %v697
    %v699 = vpop.f32.mrb[0].mxu0
    %700 = vmatprep.mubr.f32.mxu0 0.0
    %701 = vmatmul.mubr.f32.gmra.mrb[0].mxu0 %v547
    %v702 = vpop.f32.mrb[0].mxu0
    %v703 = vadd.f32 %v570, %v702
    %v704 = vpop.f32.mrb[0].mxu0
    %705 = vmatprep.mubr.f32.mxu0 0.0
    %706 = vmatmul.mubr.f32.gmra.mrb[0].mxu0 %v548
    %v707 = vpop.f32.mrb[0].mxu0
    %v708 = vadd.f32 %v570, %v707
    %v709 = vpop.f32.mrb[0].mxu0
    %710 = vmatprep.mubr.f32.mxu0 0.0
    %711 = vmatmul.mubr.f32.gmra.mrb[0].mxu0 %v549
    %v712 = vpop.f32.mrb[0].mxu0
    %v713 = vadd.f32 %v570, %v712
    %v714 = vpop.f32.mrb[0].mxu0
    %715 = vdwg.mxu0
    %v716 = vmax.f32 %v638, 0.0
    %v717 = vmax.f32 %v643, 0.0
    %v718 = vmax.f32 %v648, 0.0
    %v719 = vmax.f32 %v653, 0.0
    %v720 = vmax.f32 %v658, 0.0
    %v721 = vmax.f32 %v663, 0.0
    %v722 = vmax.f32 %v668, 0.0
    %v723 = vmax.f32 %v673, 0.0
    %v724 = vmax.f32 %v678, 0.0
    %v725 = vmax.f32 %v683, 0.0
    %v726 = vmax.f32 %v688, 0.0
    %v727 = vmax.f32 %v693, 0.0
    %v728 = vmax.f32 %v698, 0.0
    %v729 = vmax.f32 %v703, 0.0
    %v730 = vmax.f32 %v708, 0.0
    %v731 = vmax.f32 %v713, 0.0
    %s732 = scalar_lea.vmem [#allocation2], 384
    %v733 = vld [vmem:[%s732] sm:$0xff]
    %v734 = vld [vmem:[%s732 + $0x8] sm:$0xff]
    %v735 = vld [vmem:[%s732 + $0x10] sm:$0xff]
    %v736 = vld [vmem:[%s732 + $0x18] sm:$0xff]
    %v737 = vld [vmem:[%s732 + $0x20] sm:$0xff]
    %v738 = vld [vmem:[%s732 + $0x28] sm:$0xff]
    %v739 = vld [vmem:[%s732 + $0x30] sm:$0xff]
    %v740 = vld [vmem:[%s732 + $0x38] sm:$0xff]
    %v741 = vld [vmem:[%s732 + $0x40] sm:$0xff]
    %v742 = vld [vmem:[%s732 + $0x48] sm:$0xff]
    %v743 = vld [vmem:[%s732 + $0x50] sm:$0xff]
    %v744 = vld [vmem:[%s732 + $0x58] sm:$0xff]
    %v745 = vld [vmem:[%s732 + $0x60] sm:$0xff]
    %v746 = vld [vmem:[%s732 + $0x68] sm:$0xff]
    %v747 = vld [vmem:[%s732 + $0x70] sm:$0xff]
    %v748 = vld [vmem:[%s732 + $0x78] sm:$0xff]
    %v749 = vlaneseq
    %v750 = vshrl.u32 %v749, 7
    %v751 = vsub.s32 0, %v750
    %v752 = vrot.slane %v49, %v751
    %753 = vmatprep.subr.mxu0 0.0
    %754 = vmatpush1.msra.mxu0 %v733
    %755 = vmatprep.subr.mxu0 0.0
    %756 = vmatpush1.msra.mxu0 %v734
    %757 = vmatprep.subr.mxu0 0.0
    %758 = vmatpush1.msra.mxu0 %v735
    %759 = vmatprep.subr.mxu0 0.0
    %760 = vmatpush1.msra.mxu0 %v736
    %761 = vmatprep.subr.mxu0 0.0
    %762 = vmatpush1.msra.mxu0 %v737
    %763 = vmatprep.subr.mxu0 0.0
    %764 = vmatpush1.msra.mxu0 %v738
    %765 = vmatprep.subr.mxu0 0.0
    %766 = vmatpush1.msra.mxu0 %v739
    %767 = vmatprep.subr.mxu0 0.0
    %768 = vmatpush1.msra.mxu0 %v740
    %769 = vmatprep.subr.mxu0 0.0
    %770 = vmatpush1.msra.mxu0 %v741
    %771 = vmatprep.subr.mxu0 0.0
    %772 = vmatpush1.msra.mxu0 %v742
    %773 = vmatprep.subr.mxu0 0.0
    %774 = vmatpush1.msra.mxu0 %v743
    %775 = vmatprep.subr.mxu0 0.0
    %776 = vmatpush1.msra.mxu0 %v744
    %777 = vmatprep.subr.mxu0 0.0
    %778 = vmatpush1.msra.mxu0 %v745
    %779 = vmatprep.subr.mxu0 0.0
    %780 = vmatpush1.msra.mxu0 %v746
    %781 = vmatprep.subr.mxu0 0.0
    %782 = vmatpush1.msra.mxu0 %v747
    %783 = vmatprep.subr.mxu0 0.0
    %784 = vmatpush1.msra.mxu0 %v748
    %785 = vmatprep.subr.mxu0 0.0
    %786 = vmatpush1.msra.mxu0 0.0
    %787 = vmatprep.subr.mxu0 0.0
    %788 = vmatpush1.msra.mxu0 0.0
    %789 = vmatprep.subr.mxu0 0.0
    %790 = vmatpush1.msra.mxu0 0.0
    %791 = vmatprep.subr.mxu0 0.0
    %792 = vmatpush1.msra.mxu0 0.0
    %793 = vmatprep.subr.mxu0 0.0
    %794 = vmatpush1.msra.mxu0 0.0
    %795 = vmatprep.subr.mxu0 0.0
    %796 = vmatpush1.msra.mxu0 0.0
    %797 = vmatprep.subr.mxu0 0.0
    %798 = vmatpush1.msra.mxu0 0.0
    %799 = vmatprep.subr.mxu0 0.0
    %800 = vmatpush1.msra.mxu0 0.0
    %801 = vmatprep.subr.mxu0 0.0
    %802 = vmatpush1.msra.mxu0 0.0
    %803 = vmatprep.subr.mxu0 0.0
    %804 = vmatpush1.msra.mxu0 0.0
    %805 = vmatprep.subr.mxu0 0.0
    %806 = vmatpush1.msra.mxu0 0.0
    %807 = vmatprep.subr.mxu0 0.0
    %808 = vmatpush1.msra.mxu0 0.0
    %809 = vmatprep.subr.mxu0 0.0
    %810 = vmatpush1.msra.mxu0 0.0
    %811 = vmatprep.subr.mxu0 0.0
    %812 = vmatpush1.msra.mxu0 0.0
    %813 = vmatprep.subr.mxu0 0.0
    %814 = vmatpush1.msra.mxu0 0.0
    %815 = vmatprep.subr.mxu0 0.0
    %816 = vmatpush1.msra.mxu0 0.0
    %817 = vmatprep.mubr.f32.mxu0 0.0
    %818 = vmatmul.mubr.f32.gmra.mrb[0].mxu0 %v716
    %v819 = vpop.f32.mrb[0].mxu0
    %v820 = vadd.f32 %v752, %v819
    %v821 = vpop.f32.mrb[0].mxu0
    %822 = vmatprep.mubr.f32.mxu0 0.0
    %823 = vmatmul.mubr.f32.gmra.mrb[0].mxu0 %v717
    %v824 = vpop.f32.mrb[0].mxu0
    %v825 = vadd.f32 %v752, %v824
    %v826 = vpop.f32.mrb[0].mxu0
    %827 = vmatprep.mubr.f32.mxu0 0.0
    %828 = vmatmul.mubr.f32.gmra.mrb[0].mxu0 %v718
    %v829 = vpop.f32.mrb[0].mxu0
    %v830 = vadd.f32 %v752, %v829
    %v831 = vpop.f32.mrb[0].mxu0
    %832 = vmatprep.mubr.f32.mxu0 0.0
    %833 = vmatmul.mubr.f32.gmra.mrb[0].mxu0 %v719
    %v834 = vpop.f32.mrb[0].mxu0
    %v835 = vadd.f32 %v752, %v834
    %v836 = vpop.f32.mrb[0].mxu0
    %837 = vmatprep.mubr.f32.mxu0 0.0
    %838 = vmatmul.mubr.f32.gmra.mrb[0].mxu0 %v720
    %v839 = vpop.f32.mrb[0].mxu0
    %v840 = vadd.f32 %v752, %v839
    %v841 = vpop.f32.mrb[0].mxu0
    %842 = vmatprep.mubr.f32.mxu0 0.0
    %843 = vmatmul.mubr.f32.gmra.mrb[0].mxu0 %v721
    %v844 = vpop.f32.mrb[0].mxu0
    %v845 = vadd.f32 %v752, %v844
    %v846 = vpop.f32.mrb[0].mxu0
    %847 = vmatprep.mubr.f32.mxu0 0.0
    %848 = vmatmul.mubr.f32.gmra.mrb[0].mxu0 %v722
    %v849 = vpop.f32.mrb[0].mxu0
    %v850 = vadd.f32 %v752, %v849
    %v851 = vpop.f32.mrb[0].mxu0
    %852 = vmatprep.mubr.f32.mxu0 0.0
    %853 = vmatmul.mubr.f32.gmra.mrb[0].mxu0 %v723
    %v854 = vpop.f32.mrb[0].mxu0
    %v855 = vadd.f32 %v752, %v854
    %v856 = vpop.f32.mrb[0].mxu0
    %857 = vmatprep.mubr.f32.mxu0 0.0
    %858 = vmatmul.mubr.f32.gmra.mrb[0].mxu0 %v724
    %v859 = vpop.f32.mrb[0].mxu0
    %v860 = vadd.f32 %v752, %v859
    %v861 = vpop.f32.mrb[0].mxu0
    %862 = vmatprep.mubr.f32.mxu0 0.0
    %863 = vmatmul.mubr.f32.gmra.mrb[0].mxu0 %v725
    %v864 = vpop.f32.mrb[0].mxu0
    %v865 = vadd.f32 %v752, %v864
    %v866 = vpop.f32.mrb[0].mxu0
    %867 = vmatprep.mubr.f32.mxu0 0.0
    %868 = vmatmul.mubr.f32.gmra.mrb[0].mxu0 %v726
    %v869 = vpop.f32.mrb[0].mxu0
    %v870 = vadd.f32 %v752, %v869
    %v871 = vpop.f32.mrb[0].mxu0
    %872 = vmatprep.mubr.f32.mxu0 0.0
    %873 = vmatmul.mubr.f32.gmra.mrb[0].mxu0 %v727
    %v874 = vpop.f32.mrb[0].mxu0
    %v875 = vadd.f32 %v752, %v874
    %v876 = vpop.f32.mrb[0].mxu0
    %877 = vmatprep.mubr.f32.mxu0 0.0
    %878 = vmatmul.mubr.f32.gmra.mrb[0].mxu0 %v728
    %v879 = vpop.f32.mrb[0].mxu0
    %v880 = vadd.f32 %v752, %v879
    %v881 = vpop.f32.mrb[0].mxu0
    %882 = vmatprep.mubr.f32.mxu0 0.0
    %883 = vmatmul.mubr.f32.gmra.mrb[0].mxu0 %v729
    %v884 = vpop.f32.mrb[0].mxu0
    %v885 = vadd.f32 %v752, %v884
    %v886 = vpop.f32.mrb[0].mxu0
    %887 = vmatprep.mubr.f32.mxu0 0.0
    %888 = vmatmul.mubr.f32.gmra.mrb[0].mxu0 %v730
    %v889 = vpop.f32.mrb[0].mxu0
    %v890 = vadd.f32 %v752, %v889
    %v891 = vpop.f32.mrb[0].mxu0
    %892 = vmatprep.mubr.f32.mxu0 0.0
    %893 = vmatmul.mubr.f32.gmra.mrb[0].mxu0 %v731
    %v894 = vpop.f32.mrb[0].mxu0
    %v895 = vadd.f32 %v752, %v894
    %v896 = vpop.f32.mrb[0].mxu0
    %897 = vdwg.mxu0
    %v898 = vtanh.pop %v820
    %v899 = vtanh.pop %v825
    %v900 = vtanh.pop %v830
    %v901 = vtanh.pop %v835
    %v902 = vtanh.pop %v840
    %v903 = vtanh.pop %v845
    %v904 = vtanh.pop %v850
    %v905 = vtanh.pop %v855
    %v906 = vtanh.pop %v860
    %v907 = vtanh.pop %v865
    %v908 = vtanh.pop %v870
    %v909 = vtanh.pop %v875
    %v910 = vtanh.pop %v880
    %v911 = vtanh.pop %v885
    %v912 = vtanh.pop %v890
    %v913 = vtanh.pop %v895
    %914 = vst [vmem:[%s3] sm:$0xff] %v898
    %915 = vst [vmem:[%s3 + $0x8] sm:$0xff] %v899
    %916 = vst [vmem:[%s3 + $0x10] sm:$0xff] %v900
    %917 = vst [vmem:[%s3 + $0x18] sm:$0xff] %v901
    %918 = vst [vmem:[%s3 + $0x20] sm:$0xff] %v902
    %919 = vst [vmem:[%s3 + $0x28] sm:$0xff] %v903
    %920 = vst [vmem:[%s3 + $0x30] sm:$0xff] %v904
    %921 = vst [vmem:[%s3 + $0x38] sm:$0xff] %v905
    %922 = vst [vmem:[%s3 + $0x40] sm:$0xff] %v906
    %923 = vst [vmem:[%s3 + $0x48] sm:$0xff] %v907
    %924 = vst [vmem:[%s3 + $0x50] sm:$0xff] %v908
    %925 = vst [vmem:[%s3 + $0x58] sm:$0xff] %v909
    %926 = vst [vmem:[%s3 + $0x60] sm:$0xff] %v910
    %927 = vst [vmem:[%s3 + $0x68] sm:$0xff] %v911
    %928 = vst [vmem:[%s3 + $0x70] sm:$0xff] %v912
    %929 = vst [vmem:[%s3 + $0x78] sm:$0xff] %v913
    // Predicated region
    $region18: #{actor_forward.1} parent=1 // pred_check
      _
    $region19: #{actor_forward.1} parent=1 // pred_check_branch
      %931 = sbr.rel (0) target = $region21
    $region20: #{actor_forward.1} parent=1 // pred_region
      _
    $region21: #{actor_forward.1} parent=1 // pred_fallthru
      _
    // Predicated region
    $region22: #{actor_forward.1} parent=1 // pred_check
      _
    $region23: #{actor_forward.1} parent=1 // pred_check_branch
      %933 = sbr.rel (0) target = $region25
    $region24: #{actor_forward.1} parent=1 // pred_region
      _
    $region25: #{actor_forward.1} parent=1 // pred_fallthru
      _
    %934 = vsyncpa [#allocation3], 1

</llo_original>
